<compile_context>
chip_gen: v5e
topology: v5e:2x2
jax: 0.10.0
libtpu: 0.0.40
codegen_flags: <defaults>
</compile_context>

<pallas_src>
import jax
import jax.numpy as jnp
from jax.experimental import pallas as pl
from jax.experimental.pallas import tpu as pltpu


def _blend_kernel(alpha_ref, fg_ref, bg_ref, out_ref):
    # alpha_ref : (TH, W)     current label's alpha rows
    # fg_ref    : (3, TH, W)  foreground rows (same block across the label axis)
    # bg_ref    : (3, TH, W)  background rows
    # out_ref   : (3, TH, W)  blended output rows for this label
    a = jnp.clip(alpha_ref[...].astype(jnp.float32), 0.0, 1.0)      # (TH, W)
    fg = fg_ref[...].astype(jnp.float32)                            # (3, TH, W)
    bg = bg_ref[...].astype(jnp.float32)
    out_ref[...] = (bg + a * (fg - bg)).astype(out_ref.dtype)       # a broadcasts over C


def _blend_kernel_with_alpha(alpha_ref, fg_ref, bg_ref, out_ref, alpha_out_ref):
    a = jnp.clip(alpha_ref[...].astype(jnp.float32), 0.0, 1.0)
    fg = fg_ref[...].astype(jnp.float32)
    bg = bg_ref[...].astype(jnp.float32)
    out_ref[...] = (bg + a * (fg - bg)).astype(out_ref.dtype)
    alpha_out_ref[...] = a.astype(alpha_out_ref.dtype)


def peekaboo_forward(alphas, foreground, background, *, return_alphas=False,
                     out_dtype=None, row_block=128):
    """Pallas implementation of PeekabooSegmenter.forward (alphas provided).

    alphas:     (L, H, W)
    foreground: (3, H, W)
    background: (3, H, W)
    returns:    (L, 3, H, W) [, clamped alphas (L, H, W)]

    out_dtype: output dtype (default = alphas.dtype). On v6e/v7x passing
               jnp.bfloat16 halves the dominant output HBM traffic.
    row_block: H tile size (rows). Must be a multiple of 8 when it tiles H;
               falls back to full-H blocks if it does not divide H.
    """
    L, H, W = alphas.shape
    assert foreground.shape == (3, H, W)
    assert background.shape == (3, H, W)
    out_dtype = alphas.dtype if out_dtype is None else out_dtype

    # Row tile: use row_block if it divides H, otherwise the full plane
    # (block dim equal to the full array dim is always layout-legal).
    th = row_block if (H % row_block == 0) else H
    nh = H // th

    # Grid: h outer, l inner -> fg/bg block index is constant across the inner
    # label axis, so they are fetched once per row-block instead of once per
    # (label, row-block).  Both axes are independent ("parallel") -> megacore.
    grid = (nh, L)

    in_specs = [
        pl.BlockSpec((pl.Squeezed(), th, W), lambda h, l: (l, h, 0)),   # alphas[l]
        pl.BlockSpec((3, th, W), lambda h, l: (0, h, 0)),               # foreground
        pl.BlockSpec((3, th, W), lambda h, l: (0, h, 0)),               # background
    ]
    out_img_spec = pl.BlockSpec((pl.Squeezed(), 3, th, W), lambda h, l: (l, 0, h, 0))

    if return_alphas:
        kernel = _blend_kernel_with_alpha
        out_shape = (
            jax.ShapeDtypeStruct((L, 3, H, W), out_dtype),
            jax.ShapeDtypeStruct((L, H, W), out_dtype),
        )
        out_specs = [
            out_img_spec,
            pl.BlockSpec((pl.Squeezed(), th, W), lambda h, l: (l, h, 0)),
        ]
    else:
        kernel = _blend_kernel
        out_shape = jax.ShapeDtypeStruct((L, 3, H, W), out_dtype)
        out_specs = out_img_spec

    return pl.pallas_call(
        kernel,
        out_shape=out_shape,
        grid_spec=pltpu.PrefetchScalarGridSpec(
            num_scalar_prefetch=0,
            grid=grid,
            in_specs=in_specs,
            out_specs=out_specs,
        ),
        compiler_params=pltpu.CompilerParams(
            dimension_semantics=("parallel", "parallel"),
        ),
    )(alphas, foreground, background)


def _reference(alphas, foreground, background):
    a = jnp.clip(alphas, 0.0, 1.0)                  # (L, H, W)
    a4 = a[:, None]                                 # (L, 1, H, W)
    return foreground[None] * a4 + background[None] * (1.0 - a4)


if __name__ == "__main__":
    key = jax.random.PRNGKey(0)
    k1, k2 = jax.random.split(key, 2)

    num_labels = 2   # small synthetic label count
    H = W = 16       # small spatial size standing in for size=512

    # Deterministic synthetic inputs: foreground is a float image in [0,1];
    # background is a solid color (set_background_color analogue).
    foreground = jax.random.uniform(k1, (3, H, W), dtype=jnp.float32)
    background = jnp.stack(
        [jnp.full((H, W), 0.25, jnp.float32),
         jnp.full((H, W), 0.50, jnp.float32),
         jnp.full((H, W), 0.75, jnp.float32)]
    )
    # Raw alphas outside [0,1] to exercise the clamp.
    alphas = jax.random.normal(k2, (num_labels, H, W), dtype=jnp.float32) * 0.7 + 0.5

    ref = _reference(alphas, foreground, background)
    ref_a = jnp.clip(alphas, 0.0, 1.0)

    # Path 1: return_alphas=True, row-tiled grid (exercises th < H).
    out_images, out_alphas = peekaboo_forward(
        alphas, foreground, background, return_alphas=True, row_block=8
    )
    out_images = jax.block_until_ready(out_images)
    out_alphas = jax.block_until_ready(out_alphas)
    assert out_images.shape == (num_labels, 3, H, W)
    assert out_alphas.shape == (num_labels, H, W)
    assert jnp.allclose(out_images, ref, atol=1e-5), "image mismatch vs reference"
    assert jnp.allclose(out_alphas, ref_a, atol=1e-6), "alpha mismatch vs reference"

    # Path 2: return_alphas=False, full-plane blocks (no extra alpha write).
    out_only = peekaboo_forward(alphas, foreground, background, return_alphas=False)
    out_only = jax.block_until_ready(out_only)
    assert out_only.shape == (num_labels, 3, H, W)
    assert jnp.allclose(out_only, ref, atol=1e-5), "image mismatch (no-alpha path)"

    print("KERNEL_OK")
</pallas_src>

<mosaic_0001>
module attributes {stable_mosaic.version = 11 : i64} {
  func.func @_blend_kernel_with_alpha(%arg0: i32, %arg1: i32, %arg2: memref<1x8x16xf32, #tpu.memory_space<vmem>>, %arg3: memref<3x8x16xf32, #tpu.memory_space<vmem>>, %arg4: memref<3x8x16xf32, #tpu.memory_space<vmem>>, %arg5: memref<1x3x8x16xf32, #tpu.memory_space<vmem>>, %arg6: memref<1x8x16xf32, #tpu.memory_space<vmem>>) attributes {dimension_semantics = [#tpu.dimension_semantics<parallel>, #tpu.dimension_semantics<parallel>], iteration_bounds = array<i64: 2, 2>, scalar_prefetch = 0 : i64, scratch_operands = 0 : i64, tpu.core_type = #tpu.core_type<tc>, window_params = [{transform_indices = @transform_0, window_bounds = array<i64: 1, 8, 16>}, {transform_indices = @transform_1, window_bounds = array<i64: 3, 8, 16>}, {transform_indices = @transform_2, window_bounds = array<i64: 3, 8, 16>}, {transform_indices = @transform_3, window_bounds = array<i64: 1, 3, 8, 16>}, {transform_indices = @transform_4, window_bounds = array<i64: 1, 8, 16>}]} {
    %c0 = arith.constant 0 : index
    %c0_0 = arith.constant 0 : index
    %c0_1 = arith.constant 0 : index
    %0 = vector.load %arg2[%c0, %c0_0, %c0_1] : memref<1x8x16xf32, #tpu.memory_space<vmem>>, vector<1x8x16xf32>
    %1 = vector.shape_cast %0 : vector<1x8x16xf32> to vector<8x16xf32>
    %cst = arith.constant 0.000000e+00 : f32
    %cst_2 = arith.constant 1.000000e+00 : f32
    %2 = vector.broadcast %cst : f32 to vector<8x16xf32>
    %3 = arith.maximumf %2, %1 : vector<8x16xf32>
    %4 = vector.broadcast %cst_2 : f32 to vector<8x16xf32>
    %5 = arith.minimumf %4, %3 : vector<8x16xf32>
    %c0_3 = arith.constant 0 : index
    %c0_4 = arith.constant 0 : index
    %c0_5 = arith.constant 0 : index
    %6 = vector.load %arg3[%c0_3, %c0_4, %c0_5] : memref<3x8x16xf32, #tpu.memory_space<vmem>>, vector<3x8x16xf32>
    %c0_6 = arith.constant 0 : index
    %c0_7 = arith.constant 0 : index
    %c0_8 = arith.constant 0 : index
    %7 = vector.load %arg4[%c0_6, %c0_7, %c0_8] : memref<3x8x16xf32, #tpu.memory_space<vmem>>, vector<3x8x16xf32>
    %8 = arith.subf %6, %7 : vector<3x8x16xf32>
    %9 = vector.shape_cast %5 : vector<8x16xf32> to vector<1x8x16xf32>
    %10 = vector.broadcast %9 : vector<1x8x16xf32> to vector<3x8x16xf32>
    %11 = arith.mulf %10, %8 : vector<3x8x16xf32>
    %12 = arith.addf %7, %11 : vector<3x8x16xf32>
    %c0_9 = arith.constant 0 : index
    %c0_10 = arith.constant 0 : index
    %c0_11 = arith.constant 0 : index
    %c0_12 = arith.constant 0 : index
    %13 = vector.load %arg5[%c0_9, %c0_10, %c0_11, %c0_12] : memref<1x3x8x16xf32, #tpu.memory_space<vmem>>, vector<1x3x8x16xf32>
    %14 = vector.shape_cast %13 : vector<1x3x8x16xf32> to vector<3x8x16xf32>
    %15 = vector.shape_cast %12 : vector<3x8x16xf32> to vector<1x3x8x16xf32>
    tpu.vector_store %arg5[%c0_9, %c0_10, %c0_11, %c0_12], %15 {strides = array<i32>} : memref<1x3x8x16xf32, #tpu.memory_space<vmem>>, vector<1x3x8x16xf32>,
    %c0_13 = arith.constant 0 : index
    %c0_14 = arith.constant 0 : index
    %c0_15 = arith.constant 0 : index
    %16 = vector.load %arg6[%c0_13, %c0_14, %c0_15] : memref<1x8x16xf32, #tpu.memory_space<vmem>>, vector<1x8x16xf32>
    %17 = vector.shape_cast %16 : vector<1x8x16xf32> to vector<8x16xf32>
    %18 = vector.shape_cast %5 : vector<8x16xf32> to vector<1x8x16xf32>
    tpu.vector_store %arg6[%c0_13, %c0_14, %c0_15], %18 {strides = array<i32>} : memref<1x8x16xf32, #tpu.memory_space<vmem>>, vector<1x8x16xf32>,
    return
  }
  func.func @transform_0(%arg0: i32, %arg1: i32) -> (i32, i32, i32) {
    %c0_i32 = arith.constant 0 : i32
    %c0_i32_0 = arith.constant 0 : i32
    return %arg1, %arg0, %c0_i32 : i32, i32, i32
  }
  func.func @transform_1(%arg0: i32, %arg1: i32) -> (i32, i32, i32) {
    %c0_i32 = arith.constant 0 : i32
    %c0_i32_0 = arith.constant 0 : i32
    %c0_i32_1 = arith.constant 0 : i32
    return %c0_i32, %arg0, %c0_i32_0 : i32, i32, i32
  }
  func.func @transform_2(%arg0: i32, %arg1: i32) -> (i32, i32, i32) {
    %c0_i32 = arith.constant 0 : i32
    %c0_i32_0 = arith.constant 0 : i32
    %c0_i32_1 = arith.constant 0 : i32
    return %c0_i32, %arg0, %c0_i32_0 : i32, i32, i32
  }
  func.func @transform_3(%arg0: i32, %arg1: i32) -> (i32, i32, i32, i32) {
    %c0_i32 = arith.constant 0 : i32
    %c0_i32_0 = arith.constant 0 : i32
    %c0_i32_1 = arith.constant 0 : i32
    return %arg1, %c0_i32, %arg0, %c0_i32_0 : i32, i32, i32, i32
  }
  func.func @transform_4(%arg0: i32, %arg1: i32) -> (i32, i32, i32) {
    %c0_i32 = arith.constant 0 : i32
    %c0_i32_0 = arith.constant 0 : i32
    return %arg1, %arg0, %c0_i32 : i32, i32, i32
  }
}

</mosaic_0001>

<llo_original>
// kernel: tpu_custom_call.1
$region0: #{tpu_custom_call.1}
  #allocation0 [shape = 'u32[]', space=smem, size = 0x4, offset = 0x4, fixed_abs, tag = 'smem constant byte address 0x4 - core index']
  #allocation1 [shape = 'u32[72,128]{1,0:T(1,128)}', space=vmem, size = 0x9000, scoped, tag = 'internal scratch']
  %s0 = inlined_call_operand.hbm [shape: f32[2,16,16], index: 0, kind: input, shape index: {}]
  %s1 = inlined_call_operand.hbm [shape: f32[3,16,16], index: 1, kind: input, shape index: {}]
  %s2 = inlined_call_operand.hbm [shape: f32[3,16,16], index: 2, kind: input, shape index: {}]
  %s3 = inlined_call_operand.hbm [shape: f32[2,3,16,16], index: 3, kind: output, shape index: {0}]
  %s4 = inlined_call_operand.hbm [shape: f32[2,16,16], index: 4, kind: output, shape index: {1}]
  %5 = xla_tuple %s3, %s4
  %s6 = sld [smem:[#allocation0]]
  $region65: #{tpu_custom_call.1} parent=0
    _
  %s8 = ssub.s32 1, %s6
  %s9 = scalar_select 0, %s8, %s6
  $region1: #{tpu_custom_call.1} parent=0
    #allocation2 [shape = 'u8[8192]{0}', space=vmem, size = 0x2000, scoped, tag = 'input window, operand 0']
    #allocation3 [shape = 's32[2]{0}', space=sflag, size = 0x8, scoped, tag = 'scoped memory for tpu_custom_call.1']
    #allocation4 [shape = 's32[2]{0}', space=sflag, size = 0x8, scoped, tag = 'scoped memory for tpu_custom_call.1']
    #allocation5 [shape = 'u8[24576]{0}', space=vmem, size = 0x6000, scoped, tag = 'input window, operand 1']
    #allocation6 [shape = 's32[2]{0}', space=sflag, size = 0x8, scoped, tag = 'scoped memory for tpu_custom_call.1']
    #allocation7 [shape = 'u8[24576]{0}', space=vmem, size = 0x6000, scoped, tag = 'input window, operand 2']
    #allocation8 [shape = 'u8[24576]{0}', space=vmem, size = 0x6000, scoped, tag = 'output window, operand 0']
    #allocation9 [shape = 'u8[8192]{0}', space=vmem, size = 0x2000, scoped, tag = 'output window, operand 1']
    #allocation10 [shape = 's32[2]{0}', space=sflag, size = 0x8, scoped, tag = 'scoped memory for tpu_custom_call.1']
    %10 = vsyncpa [#allocation3], 0
    %s11 = scalar_lea.sflag [#allocation3], 1
    %12 = vsyncpa %s11, 0
    %13 = vsyncpa [#allocation6], 0
    %s14 = scalar_lea.sflag [#allocation6], 1
    %15 = vsyncpa %s14, 0
    %16 = vsyncpa [#allocation4], 0
    %s17 = scalar_lea.sflag [#allocation4], 1
    %18 = vsyncpa %s17, 0
    %19 = vsyncpa [#allocation10], 0
    %s20 = scalar_lea.sflag [#allocation10], 1
    %21 = vsyncpa %s20, 0
    loop: start=0, step=1, limit=6
    $region2: #{tpu_custom_call.1} parent=1 // loop_pre_header
      _
    $region3: #{tpu_custom_call.1} parent=1 // loop_header
      %s23 = sphi 0, %s27
      %p24 = scmp.ge.s32.totalorder %s23, 6
      %s30 = sphi 0, %s42
      %s31 = sphi 0, %s38
      %s32 = sphi 0, %s30
      %s33 = sphi 0, %s31
      %s34 = sphi 0, %s32
      %s35 = sphi 0, %s33
      %s47 = sphi 0, %s49
      %s50 = sphi 0, %s47
      %s51 = sphi 0, %s50
      %s67 = sphi 0, %s51
      %s73 = sphi 0, %s75
      %s76 = sphi 0, %s73
      %s77 = sphi 0, %s76
      %s93 = sphi 0, %s77
      %s99 = sphi 0, %s101
      %s102 = sphi 0, %s99
      %s103 = sphi 0, %s102
      %s119 = sphi 0, %s103
      %s127 = sphi 0, %s129
      %s130 = sphi 0, %s127
      %s131 = sphi 0, %s130
      %s147 = sphi 0, %s131
      %s155 = sphi 0, %s157
      %s158 = sphi 0, %s155
      %s159 = sphi 0, %s158
      %s175 = sphi 0, %s159
    $region4: #{tpu_custom_call.1} parent=1 // loop_header_branch
      %26 = sbr.rel (%p24) target = $region8
    $region5: #{tpu_custom_call.1} parent=1 // loop_body
      %s28 = ssub.s32 %s23, 1
      %s29 = ssub.s32 %s23, 2
      %s36 = sadd.s32 1, %s31
      %p37 = scmp.ge.s32.totalorder %s36, 2
      %s38 = scalar_select %p37, 0, %s36
      %s39 = sadd.s32 1, %s30
      %s40 = scalar_select %p37, %s39, %s30
      %p41 = scmp.ge.s32.totalorder %s40, 2
      %s42 = scalar_select %p41, 0, %s40
      %s43 = ssub.s32 %s31, %s38
      %s44 = ssub.s32 %s30, %s42
      %s45 = sor.u32 %s43, %s44
      %p46 = scmp.eq.s32.totalorder %s45, 0
      %s48 = sadd.s32 %s47, 1
      %s49 = scalar_select %p46, %s47, %s48
      %p52 = pneg %p46
      %p53 = scmp.eq.s32.totalorder %s23, 3
      %p54 = por %p52, %p53
      %p55 = scmp.ne.s32.totalorder %s47, %s50
      %p56 = scmp.eq.s32.totalorder %s23, 0
      %p57 = por %p55, %p56
      %p58 = scmp.ne.s32.totalorder %s47, %s50
      %p59 = scmp.eq.s32.totalorder %s28, 3
      %p60 = por %p58, %p59
      %p61 = scmp.ne.s32.totalorder %s50, %s51
      %p62 = scmp.eq.s32.totalorder %s28, 0
      %p63 = por %p61, %p62
      %p64 = scmp.ne.s32.totalorder %s50, %s51
      %p65 = scmp.eq.s32.totalorder %s29, 3
      %p66 = por %p64, %p65
      %p68 = scmp.ne.s32.totalorder %s51, %s67
      %p69 = scmp.eq.s32.totalorder %s29, 0
      %p70 = por %p68, %p69
      %s71 = ssub.s32 %s30, %s42
      %p72 = scmp.eq.s32.totalorder %s71, 0
      %s74 = sadd.s32 %s73, 1
      %s75 = scalar_select %p72, %s73, %s74
      %p78 = pneg %p72
      %p79 = scmp.eq.s32.totalorder %s23, 3
      %p80 = por %p78, %p79
      %p81 = scmp.ne.s32.totalorder %s73, %s76
      %p82 = scmp.eq.s32.totalorder %s23, 0
      %p83 = por %p81, %p82
      %p84 = scmp.ne.s32.totalorder %s73, %s76
      %p85 = scmp.eq.s32.totalorder %s28, 3
      %p86 = por %p84, %p85
      %p87 = scmp.ne.s32.totalorder %s76, %s77
      %p88 = scmp.eq.s32.totalorder %s28, 0
      %p89 = por %p87, %p88
      %p90 = scmp.ne.s32.totalorder %s76, %s77
      %p91 = scmp.eq.s32.totalorder %s29, 3
      %p92 = por %p90, %p91
      %p94 = scmp.ne.s32.totalorder %s77, %s93
      %p95 = scmp.eq.s32.totalorder %s29, 0
      %p96 = por %p94, %p95
      %s97 = ssub.s32 %s30, %s42
      %p98 = scmp.eq.s32.totalorder %s97, 0
      %s100 = sadd.s32 %s99, 1
      %s101 = scalar_select %p98, %s99, %s100
      %p104 = pneg %p98
      %p105 = scmp.eq.s32.totalorder %s23, 3
      %p106 = por %p104, %p105
      %p107 = scmp.ne.s32.totalorder %s99, %s102
      %p108 = scmp.eq.s32.totalorder %s23, 0
      %p109 = por %p107, %p108
      %p110 = scmp.ne.s32.totalorder %s99, %s102
      %p111 = scmp.eq.s32.totalorder %s28, 3
      %p112 = por %p110, %p111
      %p113 = scmp.ne.s32.totalorder %s102, %s103
      %p114 = scmp.eq.s32.totalorder %s28, 0
      %p115 = por %p113, %p114
      %p116 = scmp.ne.s32.totalorder %s102, %s103
      %p117 = scmp.eq.s32.totalorder %s29, 3
      %p118 = por %p116, %p117
      %p120 = scmp.ne.s32.totalorder %s103, %s119
      %p121 = scmp.eq.s32.totalorder %s29, 0
      %p122 = por %p120, %p121
      %s123 = ssub.s32 %s31, %s38
      %s124 = ssub.s32 %s30, %s42
      %s125 = sor.u32 %s123, %s124
      %p126 = scmp.eq.s32.totalorder %s125, 0
      %s128 = sadd.s32 %s127, 1
      %s129 = scalar_select %p126, %s127, %s128
      %p132 = pneg %p126
      %p133 = scmp.eq.s32.totalorder %s23, 3
      %p134 = por %p132, %p133
      %p135 = scmp.ne.s32.totalorder %s127, %s130
      %p136 = scmp.eq.s32.totalorder %s23, 0
      %p137 = por %p135, %p136
      %p138 = scmp.ne.s32.totalorder %s127, %s130
      %p139 = scmp.eq.s32.totalorder %s28, 3
      %p140 = por %p138, %p139
      %p141 = scmp.ne.s32.totalorder %s130, %s131
      %p142 = scmp.eq.s32.totalorder %s28, 0
      %p143 = por %p141, %p142
      %p144 = scmp.ne.s32.totalorder %s130, %s131
      %p145 = scmp.eq.s32.totalorder %s29, 3
      %p146 = por %p144, %p145
      %p148 = scmp.ne.s32.totalorder %s131, %s147
      %p149 = scmp.eq.s32.totalorder %s29, 0
      %p150 = por %p148, %p149
      %s151 = ssub.s32 %s31, %s38
      %s152 = ssub.s32 %s30, %s42
      %s153 = sor.u32 %s151, %s152
      %p154 = scmp.eq.s32.totalorder %s153, 0
      %s156 = sadd.s32 %s155, 1
      %s157 = scalar_select %p154, %s155, %s156
      %p160 = pneg %p154
      %p161 = scmp.eq.s32.totalorder %s23, 3
      %p162 = por %p160, %p161
      %p163 = scmp.ne.s32.totalorder %s155, %s158
      %p164 = scmp.eq.s32.totalorder %s23, 0
      %p165 = por %p163, %p164
      %p166 = scmp.ne.s32.totalorder %s155, %s158
      %p167 = scmp.eq.s32.totalorder %s28, 3
      %p168 = por %p166, %p167
      %p169 = scmp.ne.s32.totalorder %s158, %s159
      %p170 = scmp.eq.s32.totalorder %s28, 0
      %p171 = por %p169, %p170
      %p172 = scmp.ne.s32.totalorder %s158, %s159
      %p173 = scmp.eq.s32.totalorder %s29, 3
      %p174 = por %p172, %p173
      %p176 = scmp.ne.s32.totalorder %s159, %s175
      %p177 = scmp.eq.s32.totalorder %s29, 0
      %p178 = por %p176, %p177
      %p179 = scmp.le.s32.totalorder 1, %s23
      %p180 = scmp.lt.s32.totalorder %s23, 5
      %p181 = pnand %p179, %p180
      %p182 = pneg %p181
      // Predicated region
      $region9: #{tpu_custom_call.1} parent=5 // pred_check
        _
      $region10: #{tpu_custom_call.1} parent=5 // pred_check_branch
        %184 = sbr.rel (%p181) target = $region12
      $region11: #{tpu_custom_call.1} parent=5 // pred_region
        %s185 = ssub.s32 %s23, 1
      $region12: #{tpu_custom_call.1} parent=5 // pred_fallthru
        _
      %p186 = scmp.lt.s32.totalorder %s23, 4
      // Predicated region
      $region13: #{tpu_custom_call.1} parent=5 // pred_check
        %p187 = pneg %p186
      $region14: #{tpu_custom_call.1} parent=5 // pred_check_branch
        %189 = sbr.rel (%p187) target = $region16
      $region15: #{tpu_custom_call.1} parent=5 // pred_region
        // Predicated region
        $region17: #{tpu_custom_call.1} parent=15 // pred_check
          %p190 = pneg %p57
        $region18: #{tpu_custom_call.1} parent=15 // pred_check_branch
          %192 = sbr.rel (%p190) target = $region20
        $region19: #{tpu_custom_call.1} parent=15 // pred_region
          %s193 = sand.u32 %s47, 1
          %s194 = scalar_lea.sflag [#allocation3], %s193
          %s195 = sand.u32 %s47, 1
          %s196 = smul.addr %s195, 8
          %s197 = scalar_lea.vmem [#allocation2], %s196
          %199 = vsyncadd %s194, 0
          %s200 = smul.addr %s31, 2
          %s201 = sadd.s32 %s30, %s200
          %s202 = smul.addr %s201, 8
          %s203 = scalar_lea.hbm %s0, %s202
          %s205 = sshll.u32 %s203, 4
          %s206 = int_to_ptr.hbm [resolvable:$true] %s205
          %s207 = sshll.u32 %s197, 4
          %s208 = int_to_ptr.vmem [resolvable:$true] %s207
          %210 = dma.hbm_to_vmem [thread:$0]  %s206, 128, %s208, %s194
        $region20: #{tpu_custom_call.1} parent=15 // pred_fallthru
          _
        // Predicated region
        $region21: #{tpu_custom_call.1} parent=15 // pred_check
          %p211 = pneg %p83
        $region22: #{tpu_custom_call.1} parent=15 // pred_check_branch
          %213 = sbr.rel (%p211) target = $region24
        $region23: #{tpu_custom_call.1} parent=15 // pred_region
          %s214 = sand.u32 %s23, 1
          %s215 = scalar_lea.sflag [#allocation6], %s214
          %s216 = sand.u32 %s73, 1
          %s217 = smul.addr %s216, 24
          %s218 = scalar_lea.vmem [#allocation5], %s217
          %220 = vsyncadd %s215, 0
          %s221 = smul.addr %s30, 8
          %s222 = scalar_lea.hbm %s1, %s221
          %s223 = sshll.u32 %s222, 4
          %s224 = int_to_ptr.hbm [resolvable:$true] %s223
          %s225 = sshll.u32 %s218, 4
          %s226 = int_to_ptr.vmem [resolvable:$true] %s225
          %231 = dma.hbm_to_vmem [thread:$0]  %s224, 384, %s226, %s215, 256, 128, 8
        $region24: #{tpu_custom_call.1} parent=15 // pred_fallthru
          _
        // Predicated region
        $region25: #{tpu_custom_call.1} parent=15 // pred_check
          %p232 = pneg %p109
        $region26: #{tpu_custom_call.1} parent=15 // pred_check_branch
          %234 = sbr.rel (%p232) target = $region28
        $region27: #{tpu_custom_call.1} parent=15 // pred_region
          %s235 = sand.u32 %s23, 1
          %s236 = scalar_lea.sflag [#allocation6], %s235
          %s237 = sand.u32 %s99, 1
          %s238 = smul.addr %s237, 24
          %s239 = scalar_lea.vmem [#allocation7], %s238
          %241 = vsyncadd %s236, 0
          %s242 = smul.addr %s30, 8
          %s243 = scalar_lea.hbm %s2, %s242
          %s244 = sshll.u32 %s243, 4
          %s245 = int_to_ptr.hbm [resolvable:$true] %s244
          %s246 = sshll.u32 %s239, 4
          %s247 = int_to_ptr.vmem [resolvable:$true] %s246
          %252 = dma.hbm_to_vmem [thread:$0]  %s245, 384, %s247, %s236, 256, 128, 8
        $region28: #{tpu_custom_call.1} parent=15 // pred_fallthru
          _
      $region16: #{tpu_custom_call.1} parent=5 // pred_fallthru
        _
      %p253 = scmp.le.s32.totalorder 1, %s23
      %p254 = scmp.lt.s32.totalorder %s23, 5
      %p255 = pnand %p253, %p254
      %p256 = pneg %p255
      // Predicated region
      $region29: #{tpu_custom_call.1} parent=5 // pred_check
        _
      $region30: #{tpu_custom_call.1} parent=5 // pred_check_branch
        %258 = sbr.rel (%p255) target = $region32
      $region31: #{tpu_custom_call.1} parent=5 // pred_region
        %s259 = ssub.s32 %s23, 1
        %s260 = sand.u32 %s50, 1
        %s261 = scalar_lea.sflag [#allocation3], %s260
        %s262 = sand.u32 %s50, 1
        %s263 = smul.addr %s262, 8
        %s264 = scalar_lea.vmem [#allocation2], %s263
        // Predicated region
        $region33: #{tpu_custom_call.1} parent=31 // pred_check
          %p265 = pneg %p63
        $region34: #{tpu_custom_call.1} parent=31 // pred_check_branch
          %267 = sbr.rel (%p265) target = $region36
        $region35: #{tpu_custom_call.1} parent=31 // pred_region
          %269 = dma.done %s261, 128
        $region36: #{tpu_custom_call.1} parent=31 // pred_fallthru
          _
        %s270 = sand.u32 %s28, 1
        %s271 = scalar_lea.sflag [#allocation6], %s270
        %s272 = sand.u32 %s76, 1
        %s273 = smul.addr %s272, 24
        %s274 = scalar_lea.vmem [#allocation5], %s273
        // Predicated region
        $region37: #{tpu_custom_call.1} parent=31 // pred_check
          %p275 = pneg %p89
        $region38: #{tpu_custom_call.1} parent=31 // pred_check_branch
          %277 = sbr.rel (%p275) target = $region40
        $region39: #{tpu_custom_call.1} parent=31 // pred_region
          %279 = dma.done %s271, 384
        $region40: #{tpu_custom_call.1} parent=31 // pred_fallthru
          _
        %s280 = sand.u32 %s28, 1
        %s281 = scalar_lea.sflag [#allocation6], %s280
        %s282 = sand.u32 %s102, 1
        %s283 = smul.addr %s282, 24
        %s284 = scalar_lea.vmem [#allocation7], %s283
        // Predicated region
        $region41: #{tpu_custom_call.1} parent=31 // pred_check
          %p285 = pneg %p115
        $region42: #{tpu_custom_call.1} parent=31 // pred_check_branch
          %287 = sbr.rel (%p285) target = $region44
        $region43: #{tpu_custom_call.1} parent=31 // pred_region
          %289 = dma.done %s281, 384
        $region44: #{tpu_custom_call.1} parent=31 // pred_fallthru
          _
        %s290 = sand.u32 %s50, 1
        %s291 = scalar_lea.sflag [#allocation3], %s290
        %s292 = sand.u32 %s50, 1
        %s293 = smul.addr %s292, 8
        %s294 = scalar_lea.vmem [#allocation2], %s293
        %p295 = pneg %p63
        %p296 = pneg %p60
        %s297 = sand.u32 %s28, 1
        %s298 = scalar_lea.sflag [#allocation6], %s297
        %s299 = sand.u32 %s76, 1
        %s300 = smul.addr %s299, 24
        %s301 = scalar_lea.vmem [#allocation5], %s300
        %p302 = pneg %p89
        %p303 = pneg %p86
        %s304 = sand.u32 %s28, 1
        %s305 = scalar_lea.sflag [#allocation6], %s304
        %s306 = sand.u32 %s102, 1
        %s307 = smul.addr %s306, 24
        %s308 = scalar_lea.vmem [#allocation7], %s307
        %p309 = pneg %p115
        %p310 = pneg %p112
        %p311 = pneg %p143
        %p312 = pneg %p140
        %s313 = sand.u32 %s130, 1
        %s314 = scalar_lea.sflag [#allocation4], %s313
        %s315 = sand.u32 %s130, 1
        %s316 = smul.addr %s315, 24
        %s317 = scalar_lea.vmem [#allocation8], %s316
        %p318 = pneg %p171
        %p319 = pneg %p168
        %s320 = sand.u32 %s158, 1
        %s321 = scalar_lea.sflag [#allocation10], %s320
        %s322 = sand.u32 %s158, 1
        %s323 = smul.addr %s322, 8
        %s324 = scalar_lea.vmem [#allocation9], %s323
        %v325 = vld [vmem:[%s264] sm:$0xff]
        %v326 = vmax.f32 %v325, 0.0
        %v327 = vmin.f32 %v326, 1.0
        %v328 = vld [vmem:[%s274] sm:$0xff]
        %v329 = vld [vmem:[%s274 + $0x8] sm:$0xff]
        %v330 = vld [vmem:[%s274 + $0x10] sm:$0xff]
        %v331 = vld [vmem:[%s284] sm:$0xff]
        %v332 = vld [vmem:[%s284 + $0x8] sm:$0xff]
        %v333 = vld [vmem:[%s284 + $0x10] sm:$0xff]
        %v334 = vsub.f32 %v328, %v331
        %v335 = vsub.f32 %v329, %v332
        %v336 = vsub.f32 %v330, %v333
        %v337 = vmul.f32 %v327, %v334
        %v338 = vmul.f32 %v327, %v335
        %v339 = vmul.f32 %v327, %v336
        %v340 = vadd.f32 %v331, %v337
        %v341 = vadd.f32 %v332, %v338
        %v342 = vadd.f32 %v333, %v339
        %vm343 = vcmask 130048
        %344 = vst.msk [vmem:[%s317] sm:$0xff] %vm343, %v340
        %345 = vst.msk [vmem:[%s317 + $0x8] sm:$0xff] %vm343, %v341
        %346 = vst.msk [vmem:[%s317 + $0x10] sm:$0xff] %vm343, %v342
        %347 = vst.msk [vmem:[%s324] sm:$0xff] %vm343, %v327
        %s348 = sand.u32 %s130, 1
        %s349 = scalar_lea.sflag [#allocation4], %s348
        %s350 = sand.u32 %s130, 1
        %s351 = smul.addr %s350, 24
        %s352 = scalar_lea.vmem [#allocation8], %s351
        %s353 = sand.u32 %s158, 1
        %s354 = scalar_lea.sflag [#allocation10], %s353
        %s355 = sand.u32 %s158, 1
        %s356 = smul.addr %s355, 8
        %s357 = scalar_lea.vmem [#allocation9], %s356
        // Predicated region
        $region45: #{tpu_custom_call.1} parent=31 // pred_check
          %p358 = pneg %p140
        $region46: #{tpu_custom_call.1} parent=31 // pred_check_branch
          %360 = sbr.rel (%p358) target = $region48
        $region47: #{tpu_custom_call.1} parent=31 // pred_region
          %362 = vsyncadd %s349, 0
          %s363 = smul.addr %s33, 6
          %s364 = sadd.s32 %s32, %s363
          %s365 = smul.addr %s364, 8
          %s366 = scalar_lea.hbm %s3, %s365
          %s367 = sshll.u32 %s352, 4
          %s368 = int_to_ptr.vmem [resolvable:$true] %s367
          %s369 = sshll.u32 %s366, 4
          %s370 = int_to_ptr.hbm [resolvable:$true] %s369
          %375 = dma.vmem_to_hbm [thread:$0]  %s368, 384, %s370, %s349, 128, 256, 8
        $region48: #{tpu_custom_call.1} parent=31 // pred_fallthru
          _
        // Predicated region
        $region49: #{tpu_custom_call.1} parent=31 // pred_check
          %p376 = pneg %p168
        $region50: #{tpu_custom_call.1} parent=31 // pred_check_branch
          %378 = sbr.rel (%p376) target = $region52
        $region51: #{tpu_custom_call.1} parent=31 // pred_region
          %380 = vsyncadd %s354, 0
          %s381 = smul.addr %s33, 2
          %s382 = sadd.s32 %s32, %s381
          %s383 = smul.addr %s382, 8
          %s384 = scalar_lea.hbm %s4, %s383
          %s386 = sshll.u32 %s357, 4
          %s387 = int_to_ptr.vmem [resolvable:$true] %s386
          %s388 = sshll.u32 %s384, 4
          %s389 = int_to_ptr.hbm [resolvable:$true] %s388
          %391 = dma.vmem_to_hbm [thread:$0]  %s387, 128, %s389, %s354
        $region52: #{tpu_custom_call.1} parent=31 // pred_fallthru
          _
      $region32: #{tpu_custom_call.1} parent=5 // pred_fallthru
        _
      %p392 = scmp.le.s32.totalorder 2, %s23
      // Predicated region
      $region53: #{tpu_custom_call.1} parent=5 // pred_check
        %p393 = pneg %p392
      $region54: #{tpu_custom_call.1} parent=5 // pred_check_branch
        %395 = sbr.rel (%p393) target = $region56
      $region55: #{tpu_custom_call.1} parent=5 // pred_region
        %s396 = ssub.s32 %s23, 2
        // Predicated region
        $region57: #{tpu_custom_call.1} parent=55 // pred_check
          %p397 = pneg %p146
        $region58: #{tpu_custom_call.1} parent=55 // pred_check_branch
          %399 = sbr.rel (%p397) target = $region60
        $region59: #{tpu_custom_call.1} parent=55 // pred_region
          %s400 = sand.u32 %s131, 1
          %s401 = scalar_lea.sflag [#allocation4], %s400
          %s402 = sand.u32 %s131, 1
          %s403 = smul.addr %s402, 24
          %s404 = scalar_lea.vmem [#allocation8], %s403
          %406 = dma.done %s401, 384
        $region60: #{tpu_custom_call.1} parent=55 // pred_fallthru
          _
        // Predicated region
        $region61: #{tpu_custom_call.1} parent=55 // pred_check
          %p407 = pneg %p174
        $region62: #{tpu_custom_call.1} parent=55 // pred_check_branch
          %409 = sbr.rel (%p407) target = $region64
        $region63: #{tpu_custom_call.1} parent=55 // pred_region
          %s410 = sand.u32 %s159, 1
          %s411 = scalar_lea.sflag [#allocation10], %s410
          %s412 = sand.u32 %s159, 1
          %s413 = smul.addr %s412, 8
          %s414 = scalar_lea.vmem [#allocation9], %s413
          %416 = dma.done %s411, 128
        $region64: #{tpu_custom_call.1} parent=55 // pred_fallthru
          _
      $region56: #{tpu_custom_call.1} parent=5 // pred_fallthru
        _
    $region6: #{tpu_custom_call.1} parent=1 // loop_footer
      %s27 = sadd.s32 1, %s23
    $region7: #{tpu_custom_call.1} parent=1 // loop_footer_branch
      %22 = sbr.rel target = $region3
    $region8: #{tpu_custom_call.1} parent=1 // loop_exit
      _
    %417 = vsyncpa [#allocation3], 1
    %s418 = scalar_lea.sflag [#allocation3], 1
    %419 = vsyncpa %s418, 1
    %420 = vsyncpa [#allocation6], 1
    %s421 = scalar_lea.sflag [#allocation6], 1
    %422 = vsyncpa %s421, 1
    %423 = vsyncpa [#allocation4], 1
    %s424 = scalar_lea.sflag [#allocation4], 1
    %425 = vsyncpa %s424, 1
    %426 = vsyncpa [#allocation10], 1
    %s427 = scalar_lea.sflag [#allocation10], 1
    %428 = vsyncpa %s427, 1

</llo_original>
